<compile_context>
chip_gen: v5e
topology: v5e:2x2
jax: 0.10.0
libtpu: 0.0.40
codegen_flags: <defaults>
</compile_context>

<pallas_src>
import functools

import jax
import jax.numpy as jnp
from jax.experimental import pallas as pl
from jax.experimental.pallas import tpu as pltpu


# ----------------------------------------------------------------------------
# Kernel
# ----------------------------------------------------------------------------
def block_kernel(x_ref, w1_ref, b1_ref, w2_ref, b2_ref, wh_ref, bh_ref, out_ref,
                 *, pack):
    # Layer 1: Linear + Tanh (weights stored (in, out) so x @ W). f32 accumulate.
    h = jnp.dot(x_ref[...], w1_ref[...], preferred_element_type=jnp.float32)
    h = jnp.tanh(h + b1_ref[...])
    # Layer 2: Linear + Tanh (cast activations to the streaming dtype for the MXU).
    h = jnp.dot(h.astype(w2_ref.dtype), w2_ref[...],
                preferred_element_type=jnp.float32)
    h = jnp.tanh(h + b2_ref[...])
    # Fused heads: one matmul producing [mu | log_sigma] side by side, f32.
    out = jnp.dot(h.astype(wh_ref.dtype), wh_ref[...],
                  preferred_element_type=jnp.float32) + bh_ref[...]

    if pack == 1:
        out_ref[...] = out.astype(out_ref.dtype)
    else:
        # Lane-dense packing: out is (tile_b, out2) with out2 < 128.  Write
        # `pack` contiguous row-chunks of `out` side by side along the lanes of
        # the (tile_b // pack, pack*out2 == 128) output block.  All slices are
        # static and 8-row / tile aligned; the HBM writeback DMA is dense.
        q = out_ref.shape[0]          # tile_b // pack   (multiple of 8)
        o2 = out.shape[1]             # 2 * output_dim
        for j in range(pack):
            out_ref[:, j * o2:(j + 1) * o2] = \
                out[j * q:(j + 1) * q, :].astype(out_ref.dtype)


# ----------------------------------------------------------------------------
# Tiling plan (VMEM-aware, generation-safe)
# ----------------------------------------------------------------------------
def _round_up(x, m):
    return (x + m - 1) // m * m


def _plan(batch, input_dim, out2, x_itemsize, param_bytes, tile_b_request):
    # Lane-dense packing factor for narrow outputs.
    if out2 < 128 and 128 % out2 == 0:
        pack = 128 // out2
    else:
        pack = 1
    gran = 8 * pack                                    # row granularity per tile

    # Single grid step for small batches, otherwise the requested large tile.
    tile_b = min(tile_b_request, _round_up(batch, gran))
    tile_b = max(gran, _round_up(tile_b, gran))

    def working_set(tb):
        x_tile = tb * input_dim * x_itemsize           # double-buffered input tile
        out_tile = tb * out2 * 4                       # double-buffered f32 output tile
        return 2 * (x_tile + out_tile) + 2 * param_bytes   # weights double-buffered too

    # ~44 MiB budget keeps the pipeline inside v7x's 64 MiB physical VMEM;
    # v5e/v6e have 128 MiB so this is conservative there.
    budget = 44 * 1024 * 1024
    while tile_b > gran and working_set(tile_b) > budget:
        tile_b = max(gran, _round_up(tile_b // 2, gran))

    num_tiles = pl.cdiv(batch, tile_b)
    # Request only what we need (plus margin), capped at 64 MiB (v7x physical).
    vmem_limit = int(min(64 << 20,
                         max(16 << 20, working_set(tile_b) * 5 // 4 + (2 << 20))))
    return tile_b, pack, num_tiles, vmem_limit


# ----------------------------------------------------------------------------
# Forward
# ----------------------------------------------------------------------------
@functools.partial(jax.jit,
                   static_argnames=("tile_b", "pack", "num_tiles", "vmem_limit_bytes"))
def _forward_impl(x, w1, b1, w2, b2, wh, bh, *, tile_b, pack, num_tiles,
                  vmem_limit_bytes):
    batch, input_dim = x.shape
    out2 = wh.shape[1]
    q = tile_b // pack
    lanes = pack * out2
    rows_padded = num_tiles * tile_b

    kernel = functools.partial(block_kernel, pack=pack)

    def const_spec(a):  # full-array block, constant index_map -> VMEM resident
        return pl.BlockSpec(a.shape, lambda i: (0, 0))

    packed = pl.pallas_call(
        kernel,
        out_shape=jax.ShapeDtypeStruct((rows_padded // pack, lanes), jnp.float32),
        grid=(num_tiles,),
        in_specs=[
            pl.BlockSpec((tile_b, input_dim), lambda i: (i, 0)),   # x tile (ragged last block OK)
            const_spec(w1), const_spec(b1),
            const_spec(w2), const_spec(b2),
            const_spec(wh), const_spec(bh),
        ],
        out_specs=pl.BlockSpec((q, lanes), lambda i: (i, 0)),       # lane-dense 128-wide slab
        compiler_params=pltpu.CompilerParams(
            dimension_semantics=("parallel",),   # megacore-shardable batch axis
            vmem_limit_bytes=vmem_limit_bytes,
        ),
    )(x, w1, b1, w2, b2, wh, bh)

    # Un-pack the lane-dense slab back to (rows_padded, out2) and split heads.
    # This stays in the same jit so XLA fuses it; the array is tiny vs. x.
    fused = (packed.reshape(num_tiles, q, pack, out2)
                   .transpose(0, 2, 1, 3)
                   .reshape(rows_padded, out2))
    out_dim = out2 // 2
    return fused[:batch, :out_dim], fused[:batch, out_dim:]


def block_forward(x, params, *, tile_b=2048):
    """x: (B, input_dim). `params` must come from prepare_block_params()."""
    w1 = params["w1"]
    if x.dtype != w1.dtype:
        # Fallback cast; in a real pipeline x should already arrive in the
        # streaming dtype so no extra HBM pass is taken here.
        x = x.astype(w1.dtype)
    batch, input_dim = x.shape
    out2 = params["w_heads"].shape[1]
    param_bytes = sum(int(params[k].size) * params[k].dtype.itemsize
                      for k in ("w1", "b1", "w2", "b2", "w_heads", "b_heads"))
    tb, pack, num_tiles, vmem_limit = _plan(
        batch, input_dim, out2, x.dtype.itemsize, param_bytes, tile_b)
    return _forward_impl(
        x, params["w1"], params["b1"], params["w2"], params["b2"],
        params["w_heads"], params["b_heads"],
        tile_b=tb, pack=pack, num_tiles=num_tiles, vmem_limit_bytes=vmem_limit)


# ----------------------------------------------------------------------------
# Params
# ----------------------------------------------------------------------------
def init_block_params(key, input_dim, hidden_dim, output_dim):
    """nn.Linear-style init (uniform +-1/sqrt(fan_in)); weights stored (in, out)."""
    ks = jax.random.split(key, 8)

    def linear(kw, kb, fan_in, fan_out):
        bound = 1.0 / jnp.sqrt(fan_in)
        w = jax.random.uniform(kw, (fan_in, fan_out), jnp.float32, -bound, bound)
        b = jax.random.uniform(kb, (1, fan_out), jnp.float32, -bound, bound)
        return w, b

    w1, b1 = linear(ks[0], ks[1], input_dim, hidden_dim)
    w2, b2 = linear(ks[2], ks[3], hidden_dim, hidden_dim)
    wmu, bmu = linear(ks[4], ks[5], hidden_dim, output_dim)
    wls, bls = linear(ks[6], ks[7], hidden_dim, output_dim)
    return dict(w1=w1, b1=b1, w2=w2, b2=b2, wmu=wmu, bmu=bmu, wls=wls, bls=bls)


def prepare_block_params(params, *, compute_dtype=jnp.float32, hidden_multiple=128):
    """One-time (outside the per-call path): fuse mu/log_sigma heads, zero-pad the
    hidden dim up to a multiple of 128 lanes (numerically exact), and cast the
    weights to the streaming dtype (biases stay f32 for the f32 epilogue)."""
    w1, b1 = params["w1"], params["b1"]
    w2, b2 = params["w2"], params["b2"]
    wmu, wls = params["wmu"], params["wls"]
    bmu, bls = params["bmu"], params["bls"]

    hidden = w1.shape[1]
    if hidden_multiple and hidden_multiple > 1:
        hp = _round_up(hidden, hidden_multiple)
        if hp != hidden:
            pad = hp - hidden
            w1 = jnp.pad(w1, ((0, 0), (0, pad)))
            b1 = jnp.pad(b1, ((0, 0), (0, pad)))
            w2 = jnp.pad(w2, ((0, pad), (0, pad)))
            b2 = jnp.pad(b2, ((0, 0), (0, pad)))
            wmu = jnp.pad(wmu, ((0, pad), (0, 0)))
            wls = jnp.pad(wls, ((0, pad), (0, 0)))

    w_heads = jnp.concatenate([wmu, wls], axis=1)
    b_heads = jnp.concatenate([bmu, bls], axis=1)
    cd = compute_dtype
    return dict(
        w1=w1.astype(cd), b1=b1.astype(jnp.float32),
        w2=w2.astype(cd), b2=b2.astype(jnp.float32),
        w_heads=w_heads.astype(cd), b_heads=b_heads.astype(jnp.float32),
    )


def block_forward_ref(x, p):
    h = jnp.tanh(x @ p["w1"] + p["b1"])
    h = jnp.tanh(h @ p["w2"] + p["b2"])
    return h @ p["wmu"] + p["bmu"], h @ p["wls"] + p["bls"]


# ----------------------------------------------------------------------------
if __name__ == "__main__":
    key = jax.random.PRNGKey(0)
    k_x, k_p = jax.random.split(key)

    # Small demo shapes consistent with the MLP Block (batch deliberately not a
    # multiple of the tile granularity to exercise the ragged-final-block path).
    batch, input_dim, hidden_dim, output_dim = 200, 64, 32, 16
    x = jax.random.normal(k_x, (batch, input_dim), jnp.float32)
    raw = init_block_params(k_p, input_dim, hidden_dim, output_dim)
    mu_ref, ls_ref = block_forward_ref(x, raw)

    # f32 path (exact vs. reference).
    p32 = prepare_block_params(raw, compute_dtype=jnp.float32)
    mu, log_sigma = block_forward(x, p32)
    jax.block_until_ready((mu, log_sigma))
    assert mu.shape == (batch, output_dim) and log_sigma.shape == (batch, output_dim)
    assert jnp.allclose(mu, mu_ref, atol=2e-4), "mu mismatch (f32)"
    assert jnp.allclose(log_sigma, ls_ref, atol=2e-4), "log_sigma mismatch (f32)"

    # bf16-streaming path (halves the dominant HBM read; f32 accumulation/tanh).
    p16 = prepare_block_params(raw, compute_dtype=jnp.bfloat16)
    x16 = x.astype(jnp.bfloat16)   # emulate upstream producing bf16 activations
    mu16, ls16 = block_forward(x16, p16)
    jax.block_until_ready((mu16, ls16))
    assert jnp.allclose(mu16, mu_ref, atol=5e-2), "mu mismatch (bf16)"
    assert jnp.allclose(ls16, ls_ref, atol=5e-2), "log_sigma mismatch (bf16)"

    print("KERNEL_OK")
</pallas_src>

<mosaic_0001>
module attributes {stable_mosaic.version = 11 : i64} {
  func.func @block_kernel(%arg0: i32, %arg1: memref<224x64xf32, #tpu.memory_space<vmem>>, %arg2: memref<64x128xf32, #tpu.memory_space<vmem>>, %arg3: memref<1x128xf32, #tpu.memory_space<vmem>>, %arg4: memref<128x128xf32, #tpu.memory_space<vmem>>, %arg5: memref<1x128xf32, #tpu.memory_space<vmem>>, %arg6: memref<128x32xf32, #tpu.memory_space<vmem>>, %arg7: memref<1x32xf32, #tpu.memory_space<vmem>>, %arg8: memref<56x128xf32, #tpu.memory_space<vmem>>) attributes {dimension_semantics = [#tpu.dimension_semantics<parallel>], iteration_bounds = array<i64: 1>, scalar_prefetch = 0 : i64, scratch_operands = 0 : i64, tpu.core_type = #tpu.core_type<tc>, window_params = [{transform_indices = @transform_0, window_bounds = array<i64: 224, 64>}, {pipeline_mode = #tpu.pipeline_mode<synchronous>, transform_indices = @transform_1, window_bounds = array<i64: 64, 128>}, {pipeline_mode = #tpu.pipeline_mode<synchronous>, transform_indices = @transform_2, window_bounds = array<i64: 1, 128>}, {pipeline_mode = #tpu.pipeline_mode<synchronous>, transform_indices = @transform_3, window_bounds = array<i64: 128, 128>}, {pipeline_mode = #tpu.pipeline_mode<synchronous>, transform_indices = @transform_4, window_bounds = array<i64: 1, 128>}, {pipeline_mode = #tpu.pipeline_mode<synchronous>, transform_indices = @transform_5, window_bounds = array<i64: 128, 32>}, {pipeline_mode = #tpu.pipeline_mode<synchronous>, transform_indices = @transform_6, window_bounds = array<i64: 1, 32>}, {transform_indices = @transform_7, window_bounds = array<i64: 56, 128>}]} {
    %c0 = arith.constant 0 : index
    %c0_0 = arith.constant 0 : index
    %0 = vector.load %arg1[%c0, %c0_0] : memref<224x64xf32, #tpu.memory_space<vmem>>, vector<224x64xf32>
    %c0_1 = arith.constant 0 : index
    %c0_2 = arith.constant 0 : index
    %1 = vector.load %arg2[%c0_1, %c0_2] : memref<64x128xf32, #tpu.memory_space<vmem>>, vector<64x128xf32>
    %cst = arith.constant dense<0.000000e+00> : vector<224x128xf32>
    %2 = tpu.matmul %0, %1, %cst {dimension_numbers = #tpu.dot_dimension_numbers<[1], [0], [0], [1], [0, 0, 1, 1], [], []>} : vector<224x64xf32>, vector<64x128xf32>, vector<224x128xf32> -> vector<224x128xf32>
    %c0_3 = arith.constant 0 : index
    %c0_4 = arith.constant 0 : index
    %3 = vector.load %arg3[%c0_3, %c0_4] : memref<1x128xf32, #tpu.memory_space<vmem>>, vector<1x128xf32>
    %4 = vector.broadcast %3 : vector<1x128xf32> to vector<224x128xf32>
    %5 = arith.addf %2, %4 : vector<224x128xf32>
    %6 = math.tanh %5 : vector<224x128xf32>
    %c0_5 = arith.constant 0 : index
    %c0_6 = arith.constant 0 : index
    %7 = vector.load %arg4[%c0_5, %c0_6] : memref<128x128xf32, #tpu.memory_space<vmem>>, vector<128x128xf32>
    %cst_7 = arith.constant dense<0.000000e+00> : vector<224x128xf32>
    %8 = tpu.matmul %6, %7, %cst_7 {dimension_numbers = #tpu.dot_dimension_numbers<[1], [0], [0], [1], [0, 0, 1, 1], [], []>} : vector<224x128xf32>, vector<128x128xf32>, vector<224x128xf32> -> vector<224x128xf32>
    %c0_8 = arith.constant 0 : index
    %c0_9 = arith.constant 0 : index
    %9 = vector.load %arg5[%c0_8, %c0_9] : memref<1x128xf32, #tpu.memory_space<vmem>>, vector<1x128xf32>
    %10 = vector.broadcast %9 : vector<1x128xf32> to vector<224x128xf32>
    %11 = arith.addf %8, %10 : vector<224x128xf32>
    %12 = math.tanh %11 : vector<224x128xf32>
    %c0_10 = arith.constant 0 : index
    %c0_11 = arith.constant 0 : index
    %13 = vector.load %arg6[%c0_10, %c0_11] : memref<128x32xf32, #tpu.memory_space<vmem>>, vector<128x32xf32>
    %cst_12 = arith.constant dense<0.000000e+00> : vector<224x32xf32>
    %14 = tpu.matmul %12, %13, %cst_12 {dimension_numbers = #tpu.dot_dimension_numbers<[1], [0], [0], [1], [0, 0, 1, 1], [], []>} : vector<224x128xf32>, vector<128x32xf32>, vector<224x32xf32> -> vector<224x32xf32>
    %c0_13 = arith.constant 0 : index
    %c0_14 = arith.constant 0 : index
    %15 = vector.load %arg7[%c0_13, %c0_14] : memref<1x32xf32, #tpu.memory_space<vmem>>, vector<1x32xf32>
    %16 = vector.broadcast %15 : vector<1x32xf32> to vector<224x32xf32>
    %17 = arith.addf %14, %16 : vector<224x32xf32>
    %18 = vector.extract_strided_slice %17 {offsets = [0, 0], sizes = [56, 32], strides = [1, 1]} : vector<224x32xf32> to vector<56x32xf32>
    %c0_15 = arith.constant 0 : index
    %c0_16 = arith.constant 0 : index
    %19 = vector.load %arg8[%c0_15, %c0_16] : memref<56x128xf32, #tpu.memory_space<vmem>>, vector<56x32xf32>
    tpu.vector_store %arg8[%c0_15, %c0_16], %18 {strides = array<i32>} : memref<56x128xf32, #tpu.memory_space<vmem>>, vector<56x32xf32>,
    %20 = vector.extract_strided_slice %17 {offsets = [56, 0], sizes = [56, 32], strides = [1, 1]} : vector<224x32xf32> to vector<56x32xf32>
    %c0_17 = arith.constant 0 : index
    %c32 = arith.constant 32 : index
    %21 = vector.load %arg8[%c0_17, %c32] : memref<56x128xf32, #tpu.memory_space<vmem>>, vector<56x32xf32>
    tpu.vector_store %arg8[%c0_17, %c32], %20 {strides = array<i32>} : memref<56x128xf32, #tpu.memory_space<vmem>>, vector<56x32xf32>,
    %22 = vector.extract_strided_slice %17 {offsets = [112, 0], sizes = [56, 32], strides = [1, 1]} : vector<224x32xf32> to vector<56x32xf32>
    %c0_18 = arith.constant 0 : index
    %c64 = arith.constant 64 : index
    %23 = vector.load %arg8[%c0_18, %c64] : memref<56x128xf32, #tpu.memory_space<vmem>>, vector<56x32xf32>
    tpu.vector_store %arg8[%c0_18, %c64], %22 {strides = array<i32>} : memref<56x128xf32, #tpu.memory_space<vmem>>, vector<56x32xf32>,
    %24 = vector.extract_strided_slice %17 {offsets = [168, 0], sizes = [56, 32], strides = [1, 1]} : vector<224x32xf32> to vector<56x32xf32>
    %c0_19 = arith.constant 0 : index
    %c96 = arith.constant 96 : index
    %25 = vector.load %arg8[%c0_19, %c96] : memref<56x128xf32, #tpu.memory_space<vmem>>, vector<56x32xf32>
    tpu.vector_store %arg8[%c0_19, %c96], %24 {strides = array<i32>} : memref<56x128xf32, #tpu.memory_space<vmem>>, vector<56x32xf32>,
    return
  }
  func.func @transform_0(%arg0: i32) -> (i32, i32) {
    %c0_i32 = arith.constant 0 : i32
    %c0_i32_0 = arith.constant 0 : i32
    return %arg0, %c0_i32 : i32, i32
  }
  func.func @transform_1(%arg0: i32) -> (i32, i32) {
    %c0_i32 = arith.constant 0 : i32
    %c0_i32_0 = arith.constant 0 : i32
    %c0_i32_1 = arith.constant 0 : i32
    return %c0_i32, %c0_i32_0 : i32, i32
  }
  func.func @transform_2(%arg0: i32) -> (i32, i32) {
    %c0_i32 = arith.constant 0 : i32
    %c0_i32_0 = arith.constant 0 : i32
    %c0_i32_1 = arith.constant 0 : i32
    return %c0_i32, %c0_i32_0 : i32, i32
  }
  func.func @transform_3(%arg0: i32) -> (i32, i32) {
    %c0_i32 = arith.constant 0 : i32
    %c0_i32_0 = arith.constant 0 : i32
    %c0_i32_1 = arith.constant 0 : i32
    return %c0_i32, %c0_i32_0 : i32, i32
  }
  func.func @transform_4(%arg0: i32) -> (i32, i32) {
    %c0_i32 = arith.constant 0 : i32
    %c0_i32_0 = arith.constant 0 : i32
    %c0_i32_1 = arith.constant 0 : i32
    return %c0_i32, %c0_i32_0 : i32, i32
  }
  func.func @transform_5(%arg0: i32) -> (i32, i32) {
    %c0_i32 = arith.constant 0 : i32
    %c0_i32_0 = arith.constant 0 : i32
    %c0_i32_1 = arith.constant 0 : i32
    return %c0_i32, %c0_i32_0 : i32, i32
  }
  func.func @transform_6(%arg0: i32) -> (i32, i32) {
    %c0_i32 = arith.constant 0 : i32
    %c0_i32_0 = arith.constant 0 : i32
    %c0_i32_1 = arith.constant 0 : i32
    return %c0_i32, %c0_i32_0 : i32, i32
  }
  func.func @transform_7(%arg0: i32) -> (i32, i32) {
    %c0_i32 = arith.constant 0 : i32
    %c0_i32_0 = arith.constant 0 : i32
    return %arg0, %c0_i32 : i32, i32
  }
}

</mosaic_0001>

<llo_original>
// kernel: _forward_impl.1
$region0: #{_forward_impl.1}
  #allocation0 [shape = 'u32[]', space=smem, size = 0x4, offset = 0x4, fixed_abs, tag = 'smem constant byte address 0x4 - core index']
  #allocation1 [shape = 'u32[72,128]{1,0:T(1,128)}', space=vmem, size = 0x9000, scoped, tag = 'internal scratch']
  %s0 = inlined_call_operand.vmem [shape: f32[200,64], index: 0, kind: input, shape index: {}]
  %s1 = inlined_call_operand.vmem [shape: f32[64,128], index: 1, kind: input, shape index: {}]
  %s2 = inlined_call_operand.vmem [shape: f32[1,128], index: 2, kind: input, shape index: {}]
  %s3 = inlined_call_operand.vmem [shape: f32[128,128], index: 3, kind: input, shape index: {}]
  %s4 = inlined_call_operand.vmem [shape: f32[1,128], index: 4, kind: input, shape index: {}]
  %s5 = inlined_call_operand.vmem [shape: f32[128,32], index: 5, kind: input, shape index: {}]
  %s6 = inlined_call_operand.vmem [shape: f32[1,32], index: 6, kind: input, shape index: {}]
  %s7 = inlined_call_operand.vmem [shape: f32[56,128], index: 7, kind: output, shape index: {}]
  %s8 = sld [smem:[#allocation0]]
  $region38: #{_forward_impl.1} parent=0
    _
  %s10 = ssub.s32 1, %s8
  %s11 = scalar_select 0, %s10, %s8
  // Predicated region
  $region2: #{_forward_impl.1} parent=0 // pred_check
    _
  $region3: #{_forward_impl.1} parent=0 // pred_check_branch
    %13 = sbr.rel (0) target = $region5
  $region4: #{_forward_impl.1} parent=0 // pred_region
    _
  $region5: #{_forward_impl.1} parent=0 // pred_fallthru
    _
  // Predicated region
  $region6: #{_forward_impl.1} parent=0 // pred_check
    _
  $region7: #{_forward_impl.1} parent=0 // pred_check_branch
    %15 = sbr.rel (0) target = $region9
  $region8: #{_forward_impl.1} parent=0 // pred_region
    _
  $region9: #{_forward_impl.1} parent=0 // pred_fallthru
    _
  // Predicated region
  $region10: #{_forward_impl.1} parent=0 // pred_check
    _
  $region11: #{_forward_impl.1} parent=0 // pred_check_branch
    %17 = sbr.rel (0) target = $region13
  $region12: #{_forward_impl.1} parent=0 // pred_region
    _
  $region13: #{_forward_impl.1} parent=0 // pred_fallthru
    _
  // Predicated region
  $region14: #{_forward_impl.1} parent=0 // pred_check
    _
  $region15: #{_forward_impl.1} parent=0 // pred_check_branch
    %19 = sbr.rel (0) target = $region17
  $region16: #{_forward_impl.1} parent=0 // pred_region
    _
  $region17: #{_forward_impl.1} parent=0 // pred_fallthru
    _
  // Predicated region
  $region18: #{_forward_impl.1} parent=0 // pred_check
    _
  $region19: #{_forward_impl.1} parent=0 // pred_check_branch
    %21 = sbr.rel (0) target = $region21
  $region20: #{_forward_impl.1} parent=0 // pred_region
    _
  $region21: #{_forward_impl.1} parent=0 // pred_fallthru
    _
  // Predicated region
  $region22: #{_forward_impl.1} parent=0 // pred_check
    _
  $region23: #{_forward_impl.1} parent=0 // pred_check_branch
    %23 = sbr.rel (0) target = $region25
  $region24: #{_forward_impl.1} parent=0 // pred_region
    _
  $region25: #{_forward_impl.1} parent=0 // pred_fallthru
    _
  // Predicated region
  $region26: #{_forward_impl.1} parent=0 // pred_check
    _
  $region27: #{_forward_impl.1} parent=0 // pred_check_branch
    %25 = sbr.rel (0) target = $region29
  $region28: #{_forward_impl.1} parent=0 // pred_region
    _
  $region29: #{_forward_impl.1} parent=0 // pred_fallthru
    _
  %v26 = vld [vmem:[%s0] sm:$0xff]
  %v27 = vld [vmem:[%s0 + $0x8] sm:$0xff]
  %v28 = vld [vmem:[%s0 + $0x10] sm:$0xff]
  %v29 = vld [vmem:[%s0 + $0x18] sm:$0xff]
  %v30 = vld [vmem:[%s0 + $0x20] sm:$0xff]
  %v31 = vld [vmem:[%s0 + $0x28] sm:$0xff]
  %v32 = vld [vmem:[%s0 + $0x30] sm:$0xff]
  %v33 = vld [vmem:[%s0 + $0x38] sm:$0xff]
  %v34 = vld [vmem:[%s0 + $0x40] sm:$0xff]
  %v35 = vld [vmem:[%s0 + $0x48] sm:$0xff]
  %v36 = vld [vmem:[%s0 + $0x50] sm:$0xff]
  %v37 = vld [vmem:[%s0 + $0x58] sm:$0xff]
  %v38 = vld [vmem:[%s0 + $0x60] sm:$0xff]
  %v39 = vld [vmem:[%s0 + $0x68] sm:$0xff]
  %v40 = vld [vmem:[%s0 + $0x70] sm:$0xff]
  %v41 = vld [vmem:[%s0 + $0x78] sm:$0xff]
  %v42 = vld [vmem:[%s0 + $0x80] sm:$0xff]
  %v43 = vld [vmem:[%s0 + $0x88] sm:$0xff]
  %v44 = vld [vmem:[%s0 + $0x90] sm:$0xff]
  %v45 = vld [vmem:[%s0 + $0x98] sm:$0xff]
  %v46 = vld [vmem:[%s0 + $0xa0] sm:$0xff]
  %v47 = vld [vmem:[%s0 + $0xa8] sm:$0xff]
  %v48 = vld [vmem:[%s0 + $0xb0] sm:$0xff]
  %v49 = vld [vmem:[%s0 + $0xb8] sm:$0xff]
  %v50 = vld [vmem:[%s0 + $0xc0] sm:$0xff]
  %v51 = vld [vmem:[%s0 + $0xc8] sm:$0xff]
  %v52 = vld [vmem:[%s0 + $0xd0] sm:$0xff]
  %v53 = vld [vmem:[%s0 + $0xd8] sm:$0xff]
  %v54 = vld [vmem:[%s1] sm:$0xff]
  %v55 = vld [vmem:[%s1 + $0x8] sm:$0xff]
  %v56 = vld [vmem:[%s1 + $0x10] sm:$0xff]
  %v57 = vld [vmem:[%s1 + $0x18] sm:$0xff]
  %v58 = vld [vmem:[%s1 + $0x20] sm:$0xff]
  %v59 = vld [vmem:[%s1 + $0x28] sm:$0xff]
  %v60 = vld [vmem:[%s1 + $0x30] sm:$0xff]
  %v61 = vld [vmem:[%s1 + $0x38] sm:$0xff]
  %v62 = vld [vmem:[%s2] sm:$0x1]
  %v64 = vperm.slane %v62, 0
  %vm66 = vcmask 523264
  %v68 = vsel %vm66, %v26, 0
  %v71 = vsel %vm66, %v27, 0
  %v74 = vsel %vm66, %v28, 0
  %v77 = vsel %vm66, %v29, 0
  %v80 = vsel %vm66, %v30, 0
  %v83 = vsel %vm66, %v31, 0
  %v86 = vsel %vm66, %v32, 0
  %v89 = vsel %vm66, %v33, 0
  %v92 = vsel %vm66, %v34, 0
  %v95 = vsel %vm66, %v35, 0
  %v98 = vsel %vm66, %v36, 0
  %v101 = vsel %vm66, %v37, 0
  %v104 = vsel %vm66, %v38, 0
  %v107 = vsel %vm66, %v39, 0
  %v110 = vsel %vm66, %v40, 0
  %v113 = vsel %vm66, %v41, 0
  %v116 = vsel %vm66, %v42, 0
  %v119 = vsel %vm66, %v43, 0
  %v122 = vsel %vm66, %v44, 0
  %v125 = vsel %vm66, %v45, 0
  %v128 = vsel %vm66, %v46, 0
  %v131 = vsel %vm66, %v47, 0
  %v134 = vsel %vm66, %v48, 0
  %v137 = vsel %vm66, %v49, 0
  %v140 = vsel %vm66, %v50, 0
  %v143 = vsel %vm66, %v51, 0
  %v146 = vsel %vm66, %v52, 0
  %v149 = vsel %vm66, %v53, 0
  %151 = vmatpush.msra.mxu0 0.0
  %152 = vmatpush.msra.mxu0 0.0
  %153 = vmatpush.msra.mxu0 0.0
  %154 = vmatpush.msra.mxu0 0.0
  %155 = vmatpush.msra.mxu0 0.0
  %156 = vmatpush.msra.mxu0 0.0
  %157 = vmatpush.msra.mxu0 0.0
  %158 = vmatpush.msra.mxu0 0.0
  %159 = vmatpush.msra.mxu0 %v61
  %160 = vmatpush.msra.mxu0 %v60
  %161 = vmatpush.msra.mxu0 %v59
  %162 = vmatpush.msra.mxu0 %v58
  %163 = vmatpush.msra.mxu0 %v57
  %164 = vmatpush.msra.mxu0 %v56
  %165 = vmatpush.msra.mxu0 %v55
  %166 = vmatpush.msra.mxu0 %v54
  %167 = vmatmul.f32.gmra.mxu0 %v68
  %v168 = vpop.f32.mrf.mxu0
  %v169 = vadd.f32 %v64, %v168
  %170 = vmatmul.f32.gmra.mxu0 %v71
  %v171 = vpop.f32.mrf.mxu0
  %v172 = vadd.f32 %v64, %v171
  %173 = vmatmul.f32.gmra.mxu0 %v74
  %v174 = vpop.f32.mrf.mxu0
  %v175 = vadd.f32 %v64, %v174
  %176 = vmatmul.f32.gmra.mxu0 %v77
  %v177 = vpop.f32.mrf.mxu0
  %v178 = vadd.f32 %v64, %v177
  %179 = vmatmul.f32.gmra.mxu0 %v80
  %v180 = vpop.f32.mrf.mxu0
  %v181 = vadd.f32 %v64, %v180
  %182 = vmatmul.f32.gmra.mxu0 %v83
  %v183 = vpop.f32.mrf.mxu0
  %v184 = vadd.f32 %v64, %v183
  %185 = vmatmul.f32.gmra.mxu0 %v86
  %v186 = vpop.f32.mrf.mxu0
  %v187 = vadd.f32 %v64, %v186
  %188 = vmatmul.f32.gmra.mxu0 %v89
  %v189 = vpop.f32.mrf.mxu0
  %v190 = vadd.f32 %v64, %v189
  %191 = vmatmul.f32.gmra.mxu0 %v92
  %v192 = vpop.f32.mrf.mxu0
  %v193 = vadd.f32 %v64, %v192
  %194 = vmatmul.f32.gmra.mxu0 %v95
  %v195 = vpop.f32.mrf.mxu0
  %v196 = vadd.f32 %v64, %v195
  %197 = vmatmul.f32.gmra.mxu0 %v98
  %v198 = vpop.f32.mrf.mxu0
  %v199 = vadd.f32 %v64, %v198
  %200 = vmatmul.f32.gmra.mxu0 %v101
  %v201 = vpop.f32.mrf.mxu0
  %v202 = vadd.f32 %v64, %v201
  %203 = vmatmul.f32.gmra.mxu0 %v104
  %v204 = vpop.f32.mrf.mxu0
  %v205 = vadd.f32 %v64, %v204
  %206 = vmatmul.f32.gmra.mxu0 %v107
  %v207 = vpop.f32.mrf.mxu0
  %v208 = vadd.f32 %v64, %v207
  %209 = vmatmul.f32.gmra.mxu0 %v110
  %v210 = vpop.f32.mrf.mxu0
  %v211 = vadd.f32 %v64, %v210
  %212 = vmatmul.f32.gmra.mxu0 %v113
  %v213 = vpop.f32.mrf.mxu0
  %v214 = vadd.f32 %v64, %v213
  %215 = vmatmul.f32.gmra.mxu0 %v116
  %v216 = vpop.f32.mrf.mxu0
  %v217 = vadd.f32 %v64, %v216
  %218 = vmatmul.f32.gmra.mxu0 %v119
  %v219 = vpop.f32.mrf.mxu0
  %v220 = vadd.f32 %v64, %v219
  %221 = vmatmul.f32.gmra.mxu0 %v122
  %v222 = vpop.f32.mrf.mxu0
  %v223 = vadd.f32 %v64, %v222
  %224 = vmatmul.f32.gmra.mxu0 %v125
  %v225 = vpop.f32.mrf.mxu0
  %v226 = vadd.f32 %v64, %v225
  %227 = vmatmul.f32.gmra.mxu0 %v128
  %v228 = vpop.f32.mrf.mxu0
  %v229 = vadd.f32 %v64, %v228
  %230 = vmatmul.f32.gmra.mxu0 %v131
  %v231 = vpop.f32.mrf.mxu0
  %v232 = vadd.f32 %v64, %v231
  %233 = vmatmul.f32.gmra.mxu0 %v134
  %v234 = vpop.f32.mrf.mxu0
  %v235 = vadd.f32 %v64, %v234
  %236 = vmatmul.f32.gmra.mxu0 %v137
  %v237 = vpop.f32.mrf.mxu0
  %v238 = vadd.f32 %v64, %v237
  %239 = vmatmul.f32.gmra.mxu0 %v140
  %v240 = vpop.f32.mrf.mxu0
  %v241 = vadd.f32 %v64, %v240
  %242 = vmatmul.f32.gmra.mxu0 %v143
  %v243 = vpop.f32.mrf.mxu0
  %v244 = vadd.f32 %v64, %v243
  %245 = vmatmul.f32.gmra.mxu0 %v146
  %v246 = vpop.f32.mrf.mxu0
  %v247 = vadd.f32 %v64, %v246
  %248 = vmatmul.f32.gmra.mxu0 %v149
  %v249 = vpop.f32.mrf.mxu0
  %v250 = vadd.f32 %v64, %v249
  %251 = vdwg.mxu0
  %v252 = vtanh.pop %v169
  %v253 = vtanh.pop %v172
  %v254 = vtanh.pop %v175
  %v255 = vtanh.pop %v178
  %v256 = vtanh.pop %v181
  %v257 = vtanh.pop %v184
  %v258 = vtanh.pop %v187
  %v259 = vtanh.pop %v190
  %v260 = vtanh.pop %v193
  %v261 = vtanh.pop %v196
  %v262 = vtanh.pop %v199
  %v263 = vtanh.pop %v202
  %v264 = vtanh.pop %v205
  %v265 = vtanh.pop %v208
  %v266 = vtanh.pop %v211
  %v267 = vtanh.pop %v214
  %v268 = vtanh.pop %v217
  %v269 = vtanh.pop %v220
  %v270 = vtanh.pop %v223
  %v271 = vtanh.pop %v226
  %v272 = vtanh.pop %v229
  %v273 = vtanh.pop %v232
  %v274 = vtanh.pop %v235
  %v275 = vtanh.pop %v238
  %v276 = vtanh.pop %v241
  %v277 = vtanh.pop %v244
  %v278 = vtanh.pop %v247
  %v279 = vtanh.pop %v250
  %v280 = vld [vmem:[%s3] sm:$0xff]
  %v281 = vld [vmem:[%s3 + $0x8] sm:$0xff]
  %v282 = vld [vmem:[%s3 + $0x10] sm:$0xff]
  %v283 = vld [vmem:[%s3 + $0x18] sm:$0xff]
  %v284 = vld [vmem:[%s3 + $0x20] sm:$0xff]
  %v285 = vld [vmem:[%s3 + $0x28] sm:$0xff]
  %v286 = vld [vmem:[%s3 + $0x30] sm:$0xff]
  %v287 = vld [vmem:[%s3 + $0x38] sm:$0xff]
  %v288 = vld [vmem:[%s3 + $0x40] sm:$0xff]
  %v289 = vld [vmem:[%s3 + $0x48] sm:$0xff]
  %v290 = vld [vmem:[%s3 + $0x50] sm:$0xff]
  %v291 = vld [vmem:[%s3 + $0x58] sm:$0xff]
  %v292 = vld [vmem:[%s3 + $0x60] sm:$0xff]
  %v293 = vld [vmem:[%s3 + $0x68] sm:$0xff]
  %v294 = vld [vmem:[%s3 + $0x70] sm:$0xff]
  %v295 = vld [vmem:[%s3 + $0x78] sm:$0xff]
  %v296 = vld [vmem:[%s4] sm:$0x1]
  %v298 = vperm.slane %v296, 0
  %300 = vmatpush.msra.mxu0 %v295
  %301 = vmatpush.msra.mxu0 %v294
  %302 = vmatpush.msra.mxu0 %v293
  %303 = vmatpush.msra.mxu0 %v292
  %304 = vmatpush.msra.mxu0 %v291
  %305 = vmatpush.msra.mxu0 %v290
  %306 = vmatpush.msra.mxu0 %v289
  %307 = vmatpush.msra.mxu0 %v288
  %308 = vmatpush.msra.mxu0 %v287
  %309 = vmatpush.msra.mxu0 %v286
  %310 = vmatpush.msra.mxu0 %v285
  %311 = vmatpush.msra.mxu0 %v284
  %312 = vmatpush.msra.mxu0 %v283
  %313 = vmatpush.msra.mxu0 %v282
  %314 = vmatpush.msra.mxu0 %v281
  %315 = vmatpush.msra.mxu0 %v280
  %316 = vmatmul.f32.gmra.mxu0 %v252
  %v317 = vpop.f32.mrf.mxu0
  %v318 = vadd.f32 %v298, %v317
  %319 = vmatmul.f32.gmra.mxu0 %v253
  %v320 = vpop.f32.mrf.mxu0
  %v321 = vadd.f32 %v298, %v320
  %322 = vmatmul.f32.gmra.mxu0 %v254
  %v323 = vpop.f32.mrf.mxu0
  %v324 = vadd.f32 %v298, %v323
  %325 = vmatmul.f32.gmra.mxu0 %v255
  %v326 = vpop.f32.mrf.mxu0
  %v327 = vadd.f32 %v298, %v326
  %328 = vmatmul.f32.gmra.mxu0 %v256
  %v329 = vpop.f32.mrf.mxu0
  %v330 = vadd.f32 %v298, %v329
  %331 = vmatmul.f32.gmra.mxu0 %v257
  %v332 = vpop.f32.mrf.mxu0
  %v333 = vadd.f32 %v298, %v332
  %334 = vmatmul.f32.gmra.mxu0 %v258
  %v335 = vpop.f32.mrf.mxu0
  %v336 = vadd.f32 %v298, %v335
  %337 = vmatmul.f32.gmra.mxu0 %v259
  %v338 = vpop.f32.mrf.mxu0
  %v339 = vadd.f32 %v298, %v338
  %340 = vmatmul.f32.gmra.mxu0 %v260
  %v341 = vpop.f32.mrf.mxu0
  %v342 = vadd.f32 %v298, %v341
  %343 = vmatmul.f32.gmra.mxu0 %v261
  %v344 = vpop.f32.mrf.mxu0
  %v345 = vadd.f32 %v298, %v344
  %346 = vmatmul.f32.gmra.mxu0 %v262
  %v347 = vpop.f32.mrf.mxu0
  %v348 = vadd.f32 %v298, %v347
  %349 = vmatmul.f32.gmra.mxu0 %v263
  %v350 = vpop.f32.mrf.mxu0
  %v351 = vadd.f32 %v298, %v350
  %352 = vmatmul.f32.gmra.mxu0 %v264
  %v353 = vpop.f32.mrf.mxu0
  %v354 = vadd.f32 %v298, %v353
  %355 = vmatmul.f32.gmra.mxu0 %v265
  %v356 = vpop.f32.mrf.mxu0
  %v357 = vadd.f32 %v298, %v356
  %358 = vmatmul.f32.gmra.mxu0 %v266
  %v359 = vpop.f32.mrf.mxu0
  %v360 = vadd.f32 %v298, %v359
  %361 = vmatmul.f32.gmra.mxu0 %v267
  %v362 = vpop.f32.mrf.mxu0
  %v363 = vadd.f32 %v298, %v362
  %364 = vmatmul.f32.gmra.mxu0 %v268
  %v365 = vpop.f32.mrf.mxu0
  %v366 = vadd.f32 %v298, %v365
  %367 = vmatmul.f32.gmra.mxu0 %v269
  %v368 = vpop.f32.mrf.mxu0
  %v369 = vadd.f32 %v298, %v368
  %370 = vmatmul.f32.gmra.mxu0 %v270
  %v371 = vpop.f32.mrf.mxu0
  %v372 = vadd.f32 %v298, %v371
  %373 = vmatmul.f32.gmra.mxu0 %v271
  %v374 = vpop.f32.mrf.mxu0
  %v375 = vadd.f32 %v298, %v374
  %376 = vmatmul.f32.gmra.mxu0 %v272
  %v377 = vpop.f32.mrf.mxu0
  %v378 = vadd.f32 %v298, %v377
  %379 = vmatmul.f32.gmra.mxu0 %v273
  %v380 = vpop.f32.mrf.mxu0
  %v381 = vadd.f32 %v298, %v380
  %382 = vmatmul.f32.gmra.mxu0 %v274
  %v383 = vpop.f32.mrf.mxu0
  %v384 = vadd.f32 %v298, %v383
  %385 = vmatmul.f32.gmra.mxu0 %v275
  %v386 = vpop.f32.mrf.mxu0
  %v387 = vadd.f32 %v298, %v386
  %388 = vmatmul.f32.gmra.mxu0 %v276
  %v389 = vpop.f32.mrf.mxu0
  %v390 = vadd.f32 %v298, %v389
  %391 = vmatmul.f32.gmra.mxu0 %v277
  %v392 = vpop.f32.mrf.mxu0
  %v393 = vadd.f32 %v298, %v392
  %394 = vmatmul.f32.gmra.mxu0 %v278
  %v395 = vpop.f32.mrf.mxu0
  %v396 = vadd.f32 %v298, %v395
  %397 = vmatmul.f32.gmra.mxu0 %v279
  %v398 = vpop.f32.mrf.mxu0
  %v399 = vadd.f32 %v298, %v398
  %400 = vdwg.mxu0
  %v401 = vtanh.pop %v318
  %v402 = vtanh.pop %v321
  %v403 = vtanh.pop %v324
  %v404 = vtanh.pop %v327
  %v405 = vtanh.pop %v330
  %v406 = vtanh.pop %v333
  %v407 = vtanh.pop %v336
  %v408 = vtanh.pop %v339
  %v409 = vtanh.pop %v342
  %v410 = vtanh.pop %v345
  %v411 = vtanh.pop %v348
  %v412 = vtanh.pop %v351
  %v413 = vtanh.pop %v354
  %v414 = vtanh.pop %v357
  %v415 = vtanh.pop %v360
  %v416 = vtanh.pop %v363
  %v417 = vtanh.pop %v366
  %v418 = vtanh.pop %v369
  %v419 = vtanh.pop %v372
  %v420 = vtanh.pop %v375
  %v421 = vtanh.pop %v378
  %v422 = vtanh.pop %v381
  %v423 = vtanh.pop %v384
  %v424 = vtanh.pop %v387
  %v425 = vtanh.pop %v390
  %v426 = vtanh.pop %v393
  %v427 = vtanh.pop %v396
  %v428 = vtanh.pop %v399
  %v429 = vld [vmem:[%s5] sm:$0xff]
  %v430 = vld [vmem:[%s5 + $0x8] sm:$0xff]
  %v431 = vld [vmem:[%s5 + $0x10] sm:$0xff]
  %v432 = vld [vmem:[%s5 + $0x18] sm:$0xff]
  %v433 = vld [vmem:[%s5 + $0x20] sm:$0xff]
  %v434 = vld [vmem:[%s5 + $0x28] sm:$0xff]
  %v435 = vld [vmem:[%s5 + $0x30] sm:$0xff]
  %v436 = vld [vmem:[%s5 + $0x38] sm:$0xff]
  %v437 = vld [vmem:[%s5 + $0x40] sm:$0xff]
  %v438 = vld [vmem:[%s5 + $0x48] sm:$0xff]
  %v439 = vld [vmem:[%s5 + $0x50] sm:$0xff]
  %v440 = vld [vmem:[%s5 + $0x58] sm:$0xff]
  %v441 = vld [vmem:[%s5 + $0x60] sm:$0xff]
  %v442 = vld [vmem:[%s5 + $0x68] sm:$0xff]
  %v443 = vld [vmem:[%s5 + $0x70] sm:$0xff]
  %v444 = vld [vmem:[%s5 + $0x78] sm:$0xff]
  %v445 = vld [vmem:[%s6] sm:$0x1]
  %v447 = vperm.slane %v445, 0
  %449 = vmatpush.msra.mxu0 %v444
  %450 = vmatpush.msra.mxu0 %v443
  %451 = vmatpush.msra.mxu0 %v442
  %452 = vmatpush.msra.mxu0 %v441
  %453 = vmatpush.msra.mxu0 %v440
  %454 = vmatpush.msra.mxu0 %v439
  %455 = vmatpush.msra.mxu0 %v438
  %456 = vmatpush.msra.mxu0 %v437
  %457 = vmatpush.msra.mxu0 %v436
  %458 = vmatpush.msra.mxu0 %v435
  %459 = vmatpush.msra.mxu0 %v434
  %460 = vmatpush.msra.mxu0 %v433
  %461 = vmatpush.msra.mxu0 %v432
  %462 = vmatpush.msra.mxu0 %v431
  %463 = vmatpush.msra.mxu0 %v430
  %464 = vmatpush.msra.mxu0 %v429
  %465 = vmatmul.f32.gmra.mxu0 %v401
  %v466 = vpop.f32.mrf.mxu0
  %v467 = vadd.f32 %v447, %v466
  %468 = vmatmul.f32.gmra.mxu0 %v402
  %v469 = vpop.f32.mrf.mxu0
  %v470 = vadd.f32 %v447, %v469
  %471 = vmatmul.f32.gmra.mxu0 %v403
  %v472 = vpop.f32.mrf.mxu0
  %v473 = vadd.f32 %v447, %v472
  %474 = vmatmul.f32.gmra.mxu0 %v404
  %v475 = vpop.f32.mrf.mxu0
  %v476 = vadd.f32 %v447, %v475
  %477 = vmatmul.f32.gmra.mxu0 %v405
  %v478 = vpop.f32.mrf.mxu0
  %v479 = vadd.f32 %v447, %v478
  %480 = vmatmul.f32.gmra.mxu0 %v406
  %v481 = vpop.f32.mrf.mxu0
  %v482 = vadd.f32 %v447, %v481
  %483 = vmatmul.f32.gmra.mxu0 %v407
  %v484 = vpop.f32.mrf.mxu0
  %v485 = vadd.f32 %v447, %v484
  %486 = vmatmul.f32.gmra.mxu0 %v408
  %v487 = vpop.f32.mrf.mxu0
  %v488 = vadd.f32 %v447, %v487
  %489 = vmatmul.f32.gmra.mxu0 %v409
  %v490 = vpop.f32.mrf.mxu0
  %v491 = vadd.f32 %v447, %v490
  %492 = vmatmul.f32.gmra.mxu0 %v410
  %v493 = vpop.f32.mrf.mxu0
  %v494 = vadd.f32 %v447, %v493
  %495 = vmatmul.f32.gmra.mxu0 %v411
  %v496 = vpop.f32.mrf.mxu0
  %v497 = vadd.f32 %v447, %v496
  %498 = vmatmul.f32.gmra.mxu0 %v412
  %v499 = vpop.f32.mrf.mxu0
  %v500 = vadd.f32 %v447, %v499
  %501 = vmatmul.f32.gmra.mxu0 %v413
  %v502 = vpop.f32.mrf.mxu0
  %v503 = vadd.f32 %v447, %v502
  %504 = vmatmul.f32.gmra.mxu0 %v414
  %v505 = vpop.f32.mrf.mxu0
  %v506 = vadd.f32 %v447, %v505
  %507 = vmatmul.f32.gmra.mxu0 %v415
  %v508 = vpop.f32.mrf.mxu0
  %v509 = vadd.f32 %v447, %v508
  %510 = vmatmul.f32.gmra.mxu0 %v416
  %v511 = vpop.f32.mrf.mxu0
  %v512 = vadd.f32 %v447, %v511
  %513 = vmatmul.f32.gmra.mxu0 %v417
  %v514 = vpop.f32.mrf.mxu0
  %v515 = vadd.f32 %v447, %v514
  %516 = vmatmul.f32.gmra.mxu0 %v418
  %v517 = vpop.f32.mrf.mxu0
  %v518 = vadd.f32 %v447, %v517
  %519 = vmatmul.f32.gmra.mxu0 %v419
  %v520 = vpop.f32.mrf.mxu0
  %v521 = vadd.f32 %v447, %v520
  %522 = vmatmul.f32.gmra.mxu0 %v420
  %v523 = vpop.f32.mrf.mxu0
  %v524 = vadd.f32 %v447, %v523
  %525 = vmatmul.f32.gmra.mxu0 %v421
  %v526 = vpop.f32.mrf.mxu0
  %v527 = vadd.f32 %v447, %v526
  %528 = vmatmul.f32.gmra.mxu0 %v422
  %v529 = vpop.f32.mrf.mxu0
  %v530 = vadd.f32 %v447, %v529
  %531 = vmatmul.f32.gmra.mxu0 %v423
  %v532 = vpop.f32.mrf.mxu0
  %v533 = vadd.f32 %v447, %v532
  %534 = vmatmul.f32.gmra.mxu0 %v424
  %v535 = vpop.f32.mrf.mxu0
  %v536 = vadd.f32 %v447, %v535
  %537 = vmatmul.f32.gmra.mxu0 %v425
  %v538 = vpop.f32.mrf.mxu0
  %v539 = vadd.f32 %v447, %v538
  %540 = vmatmul.f32.gmra.mxu0 %v426
  %v541 = vpop.f32.mrf.mxu0
  %v542 = vadd.f32 %v447, %v541
  %543 = vmatmul.f32.gmra.mxu0 %v427
  %v544 = vpop.f32.mrf.mxu0
  %v545 = vadd.f32 %v447, %v544
  %546 = vmatmul.f32.gmra.mxu0 %v428
  %v547 = vpop.f32.mrf.mxu0
  %v548 = vadd.f32 %v447, %v547
  %549 = vdwg.mxu0
  %vm550 = vcmask 261120
  %551 = vst.msk [vmem:[%s7] sm:$0xff] %vm550, %v467
  %552 = vst.msk [vmem:[%s7 + $0x8] sm:$0xff] %vm550, %v470
  %553 = vst.msk [vmem:[%s7 + $0x10] sm:$0xff] %vm550, %v473
  %554 = vst.msk [vmem:[%s7 + $0x18] sm:$0xff] %vm550, %v476
  %555 = vst.msk [vmem:[%s7 + $0x20] sm:$0xff] %vm550, %v479
  %556 = vst.msk [vmem:[%s7 + $0x28] sm:$0xff] %vm550, %v482
  %557 = vst.msk [vmem:[%s7 + $0x30] sm:$0xff] %vm550, %v485
  %565 = vrot.lane.b32.xlu0 %v488, 32
  %v566 = vpop.permute.xlu0 %565
  %567 = vrot.lane.b32.xlu0 %v491, 32
  %v568 = vpop.permute.xlu0 %567
  %569 = vrot.lane.b32.xlu0 %v494, 32
  %v570 = vpop.permute.xlu0 %569
  %571 = vrot.lane.b32.xlu0 %v497, 32
  %v572 = vpop.permute.xlu0 %571
  %573 = vrot.lane.b32.xlu0 %v500, 32
  %v574 = vpop.permute.xlu0 %573
  %575 = vrot.lane.b32.xlu0 %v503, 32
  %v576 = vpop.permute.xlu0 %575
  %577 = vrot.lane.b32.xlu0 %v506, 32
  %v578 = vpop.permute.xlu0 %577
  %vm586 = vcmask 523520
  %587 = vst.msk [vmem:[%s7] sm:$0xff] %vm586, %v566
  %588 = vst.msk [vmem:[%s7 + $0x8] sm:$0xff] %vm586, %v568
  %589 = vst.msk [vmem:[%s7 + $0x10] sm:$0xff] %vm586, %v570
  %590 = vst.msk [vmem:[%s7 + $0x18] sm:$0xff] %vm586, %v572
  %591 = vst.msk [vmem:[%s7 + $0x20] sm:$0xff] %vm586, %v574
  %592 = vst.msk [vmem:[%s7 + $0x28] sm:$0xff] %vm586, %v576
  %593 = vst.msk [vmem:[%s7 + $0x30] sm:$0xff] %vm586, %v578
  %601 = vrot.lane.b32.xlu0 %v509, 64
  %v602 = vpop.permute.xlu0 %601
  %603 = vrot.lane.b32.xlu0 %v512, 64
  %v604 = vpop.permute.xlu0 %603
  %605 = vrot.lane.b32.xlu0 %v515, 64
  %v606 = vpop.permute.xlu0 %605
  %607 = vrot.lane.b32.xlu0 %v518, 64
  %v608 = vpop.permute.xlu0 %607
  %609 = vrot.lane.b32.xlu0 %v521, 64
  %v610 = vpop.permute.xlu0 %609
  %611 = vrot.lane.b32.xlu0 %v524, 64
  %v612 = vpop.permute.xlu0 %611
  %613 = vrot.lane.b32.xlu0 %v527, 64
  %v614 = vpop.permute.xlu0 %613
  %vm622 = vcmask 785920
  %623 = vst.msk [vmem:[%s7] sm:$0xff] %vm622, %v602
  %624 = vst.msk [vmem:[%s7 + $0x8] sm:$0xff] %vm622, %v604
  %625 = vst.msk [vmem:[%s7 + $0x10] sm:$0xff] %vm622, %v606
  %626 = vst.msk [vmem:[%s7 + $0x18] sm:$0xff] %vm622, %v608
  %627 = vst.msk [vmem:[%s7 + $0x20] sm:$0xff] %vm622, %v610
  %628 = vst.msk [vmem:[%s7 + $0x28] sm:$0xff] %vm622, %v612
  %629 = vst.msk [vmem:[%s7 + $0x30] sm:$0xff] %vm622, %v614
  %637 = vrot.lane.b32.xlu0 %v530, 96
  %v638 = vpop.permute.xlu0 %637
  %639 = vrot.lane.b32.xlu0 %v533, 96
  %v640 = vpop.permute.xlu0 %639
  %641 = vrot.lane.b32.xlu0 %v536, 96
  %v642 = vpop.permute.xlu0 %641
  %643 = vrot.lane.b32.xlu0 %v539, 96
  %v644 = vpop.permute.xlu0 %643
  %645 = vrot.lane.b32.xlu0 %v542, 96
  %v646 = vpop.permute.xlu0 %645
  %647 = vrot.lane.b32.xlu0 %v545, 96
  %v648 = vpop.permute.xlu0 %647
  %649 = vrot.lane.b32.xlu0 %v548, 96
  %v650 = vpop.permute.xlu0 %649
  %vm658 = vcmask 1048320
  %659 = vst.msk [vmem:[%s7] sm:$0xff] %vm658, %v638
  %660 = vst.msk [vmem:[%s7 + $0x8] sm:$0xff] %vm658, %v640
  %661 = vst.msk [vmem:[%s7 + $0x10] sm:$0xff] %vm658, %v642
  %662 = vst.msk [vmem:[%s7 + $0x18] sm:$0xff] %vm658, %v644
  %663 = vst.msk [vmem:[%s7 + $0x20] sm:$0xff] %vm658, %v646
  %664 = vst.msk [vmem:[%s7 + $0x28] sm:$0xff] %vm658, %v648
  %665 = vst.msk [vmem:[%s7 + $0x30] sm:$0xff] %vm658, %v650
  // Predicated region
  $region30: #{_forward_impl.1} parent=0 // pred_check
    _
  $region31: #{_forward_impl.1} parent=0 // pred_check_branch
    %667 = sbr.rel (0) target = $region33
  $region32: #{_forward_impl.1} parent=0 // pred_region
    _
  $region33: #{_forward_impl.1} parent=0 // pred_fallthru
    _
  // Predicated region
  $region34: #{_forward_impl.1} parent=0 // pred_check
    _
  $region35: #{_forward_impl.1} parent=0 // pred_check_branch
    %669 = sbr.rel (0) target = $region37
  $region36: #{_forward_impl.1} parent=0 // pred_region
    _
  $region37: #{_forward_impl.1} parent=0 // pred_fallthru
    _

</llo_original>
